<compile_context>
chip_gen: v7x
topology: tpu7x:2x2x1
jax: 0.10.0
libtpu: 0.0.40
codegen_flags: <defaults>
</compile_context>

<pallas_src>
import functools

import numpy as np
import jax
import jax.numpy as jnp
from jax.experimental import pallas as pl
from jax.experimental.pallas import tpu as pltpu


def _bilinear_matrix_np(in_size: int, out_size: int) -> np.ndarray:
    """Interpolation matrix U (out_size, in_size), bilinear, align_corners=True."""
    if in_size == 1:
        return np.ones((out_size, 1), dtype=np.float64)
    src = np.arange(out_size, dtype=np.float64) * (in_size - 1) / (out_size - 1)
    lo = np.clip(np.floor(src).astype(np.int64), 0, in_size - 2)
    frac = src - lo
    rows = np.arange(out_size)
    u = np.zeros((out_size, in_size), dtype=np.float64)
    u[rows, lo] += 1.0 - frac
    u[rows, lo + 1] += frac
    return u


@functools.lru_cache(maxsize=None)
def _kron_upsample_operator(h: int, w: int) -> jnp.ndarray:
    """Kt = (Uh ⊗ Uw)^T, shape (H*W, 4*H*W), f32. Built host-side, cached per (h, w)."""
    uh = _bilinear_matrix_np(h, 2 * h)      # (H2, H)
    uw = _bilinear_matrix_np(w, 2 * w)      # (W2, W)
    kt = np.kron(uh, uw).T.astype(np.float32)
    return jnp.asarray(kt)


def _outconv_kernel(w_ref, b_ref, x_ref, kt_ref, o_ref):
    # w_ref : SMEM (Cout, Cin)      1x1 conv weights (scalar reads)
    # b_ref : SMEM (Cout,)          bias (scalar reads)
    # x_ref : VMEM (N*Cin, H*W)     lane-dense input planes, row r = (n, c)
    # kt_ref: VMEM (H*W, H2*W2)     transposed Kronecker upsample operator
    # o_ref : VMEM (N*Cout, H2*W2)  lane-dense output planes, row r = (n, o)
    cout, cin = w_ref.shape
    n = x_ref.shape[0] // cin

    # Conv-first channel mix on the VPU (SMEM scalar weights, broadcast muls).
    rows = []
    for b in range(n):
        for o in range(cout):
            acc = w_ref[o, 0] * x_ref[b * cin:b * cin + 1, :]
            for c in range(1, cin):
                acc = acc + w_ref[o, c] * x_ref[b * cin + c:b * cin + c + 1, :]
            rows.append(acc)
    mixed = rows[0] if len(rows) == 1 else jnp.concatenate(rows, axis=0)  # (N*Cout, HW)

    # One batched MXU matmul upsamples all N*Cout planes at once (lane-dense).
    up = jnp.dot(mixed, kt_ref[...], preferred_element_type=jnp.float32)  # (N*Cout, HW2)

    # Bias (SMEM scalar broadcast) + sigmoid_256, single lane-dense store.
    if cout == 1:
        z = up + b_ref[0]
    else:
        z = jnp.concatenate(
            [up[r:r + 1, :] + b_ref[r % cout] for r in range(n * cout)], axis=0)
    o_ref[...] = (256.0 * jax.nn.sigmoid(z)).astype(o_ref.dtype)


def outconv_pallas(x, conv_w, conv_b):
    """x: (N, Cin, H, W) f32; conv_w: (Cout, Cin) f32; conv_b: (Cout,) f32."""
    n, cin, h, w = x.shape
    cout, cin_w = conv_w.shape
    assert cin_w == cin
    h2, w2 = 2 * h, 2 * w
    hw, hw2 = h * w, h2 * w2

    kt_bytes = hw * hw2 * 4
    # Dense Kronecker operator only for small output heads (budget v5e-safe).
    assert kt_bytes <= 4 * 1024 * 1024, (
        "Kron upsample operator too large; use separable/tiled matmuls instead.")

    kt = _kron_upsample_operator(h, w)          # (HW, HW2) f32 cached constant
    x2 = x.reshape(n * cin, hw)                 # contiguous, lane-dense rows
    b1 = conv_b.reshape(cout)

    io_bytes = (n * cin * hw + n * cout * hw2) * 4
    vmem_limit = int(min(16 * 1024 * 1024,
                         max(8 * 1024 * 1024, 2 * (kt_bytes + io_bytes) + (1 << 20))))

    out2 = pl.pallas_call(
        _outconv_kernel,
        out_shape=jax.ShapeDtypeStruct((n * cout, hw2), jnp.float32),
        in_specs=[
            pl.BlockSpec(memory_space=pltpu.MemorySpace.SMEM),  # conv weights
            pl.BlockSpec(memory_space=pltpu.MemorySpace.SMEM),  # bias
            pl.BlockSpec(memory_space=pltpu.MemorySpace.VMEM),  # input planes
            pl.BlockSpec(memory_space=pltpu.MemorySpace.VMEM),  # Kt operator
        ],
        out_specs=pl.BlockSpec(memory_space=pltpu.MemorySpace.VMEM),
        compiler_params=pltpu.CompilerParams(vmem_limit_bytes=vmem_limit),
    )(conv_w, b1, x2, kt)

    return out2.reshape(n, cout, h2, w2)


def outconv_reference(x, conv_w, conv_b):
    """Pure-JAX reference: bilinear x2 upsample (align_corners) -> 1x1 conv -> 256*sigmoid."""
    _, _, h, w = x.shape
    uh = jnp.asarray(_bilinear_matrix_np(h, 2 * h), dtype=jnp.float32)  # (H2, H)
    uw = jnp.asarray(_bilinear_matrix_np(w, 2 * w), dtype=jnp.float32)  # (W2, W)
    up = jnp.einsum("ij,ncjw->nciw", uh, x)
    up = jnp.einsum("kw,nciw->ncik", uw, up)
    y = jnp.einsum("oc,nchw->nohw", conv_w, up) + conv_b[None, :, None, None]
    return 256.0 * jax.nn.sigmoid(y)


if __name__ == "__main__":
    # Shapes consistent with the module head: batch=2, in_channels=4,
    # out_channels=1 (greyscale, sigmoid_256), spatial 16x16 (-> 32x32 out).
    # TODO(synk): ConvTranspose2d path (bilinear=False) and the 'binary' plain-
    # sigmoid branch are not implemented (module default: bilinear + greyscale).
    N, CIN, COUT, H, W = 2, 4, 1, 16, 16

    key = jax.random.PRNGKey(0)
    kx, kw, kb = jax.random.split(key, 3)

    x = jax.random.normal(kx, (N, CIN, H, W), dtype=jnp.float32)
    bound = 1.0 / (CIN ** 0.5)
    conv_w = jax.random.uniform(kw, (COUT, CIN), minval=-bound, maxval=bound,
                                dtype=jnp.float32)
    conv_b = jax.random.uniform(kb, (COUT,), minval=-bound, maxval=bound,
                                dtype=jnp.float32)

    out = jax.block_until_ready(outconv_pallas(x, conv_w, conv_b))
    ref = outconv_reference(x, conv_w, conv_b)

    assert out.shape == (N, COUT, 2 * H, 2 * W), out.shape
    assert jnp.allclose(out, ref, atol=1e-3, rtol=1e-3), float(jnp.max(jnp.abs(out - ref)))

    print("KERNEL_OK")
</pallas_src>

<mosaic_0001>
module attributes {stable_mosaic.version = 11 : i64} {
  func.func @_outconv_kernel(%arg0: memref<1x4xf32, #tpu.memory_space<smem>>, %arg1: memref<1xf32, #tpu.memory_space<smem>>, %arg2: memref<8x256xf32, #tpu.memory_space<vmem>>, %arg3: memref<256x1024xf32, #tpu.memory_space<vmem>>, %arg4: memref<2x1024xf32, #tpu.memory_space<vmem>>) attributes {dimension_semantics = [], scalar_prefetch = 0 : i64, scratch_operands = 0 : i64, tpu.core_type = #tpu.core_type<tc>} {
    %c0 = arith.constant 0 : index
    %c0_0 = arith.constant 0 : index
    %0 = memref.load %arg0[%c0, %c0_0] : memref<1x4xf32, #tpu.memory_space<smem>>
    %c0_1 = arith.constant 0 : index
    %c0_2 = arith.constant 0 : index
    %1 = vector.load %arg2[%c0_1, %c0_2] : memref<8x256xf32, #tpu.memory_space<vmem>>, vector<1x256xf32>
    %2 = vector.broadcast %0 : f32 to vector<1x256xf32>
    %3 = arith.mulf %2, %1 : vector<1x256xf32>
    %c0_3 = arith.constant 0 : index
    %c1 = arith.constant 1 : index
    %4 = memref.load %arg0[%c0_3, %c1] : memref<1x4xf32, #tpu.memory_space<smem>>
    %c1_4 = arith.constant 1 : index
    %c0_5 = arith.constant 0 : index
    %5 = vector.load %arg2[%c1_4, %c0_5] : memref<8x256xf32, #tpu.memory_space<vmem>>, vector<1x256xf32>
    %6 = vector.broadcast %4 : f32 to vector<1x256xf32>
    %7 = arith.mulf %6, %5 : vector<1x256xf32>
    %8 = arith.addf %3, %7 : vector<1x256xf32>
    %c0_6 = arith.constant 0 : index
    %c2 = arith.constant 2 : index
    %9 = memref.load %arg0[%c0_6, %c2] : memref<1x4xf32, #tpu.memory_space<smem>>
    %c2_7 = arith.constant 2 : index
    %c0_8 = arith.constant 0 : index
    %10 = vector.load %arg2[%c2_7, %c0_8] : memref<8x256xf32, #tpu.memory_space<vmem>>, vector<1x256xf32>
    %11 = vector.broadcast %9 : f32 to vector<1x256xf32>
    %12 = arith.mulf %11, %10 : vector<1x256xf32>
    %13 = arith.addf %8, %12 : vector<1x256xf32>
    %c0_9 = arith.constant 0 : index
    %c3 = arith.constant 3 : index
    %14 = memref.load %arg0[%c0_9, %c3] : memref<1x4xf32, #tpu.memory_space<smem>>
    %c3_10 = arith.constant 3 : index
    %c0_11 = arith.constant 0 : index
    %15 = vector.load %arg2[%c3_10, %c0_11] : memref<8x256xf32, #tpu.memory_space<vmem>>, vector<1x256xf32>
    %16 = vector.broadcast %14 : f32 to vector<1x256xf32>
    %17 = arith.mulf %16, %15 : vector<1x256xf32>
    %18 = arith.addf %13, %17 : vector<1x256xf32>
    %c0_12 = arith.constant 0 : index
    %c0_13 = arith.constant 0 : index
    %19 = memref.load %arg0[%c0_12, %c0_13] : memref<1x4xf32, #tpu.memory_space<smem>>
    %c4 = arith.constant 4 : index
    %c0_14 = arith.constant 0 : index
    %20 = vector.load %arg2[%c4, %c0_14] : memref<8x256xf32, #tpu.memory_space<vmem>>, vector<1x256xf32>
    %21 = vector.broadcast %19 : f32 to vector<1x256xf32>
    %22 = arith.mulf %21, %20 : vector<1x256xf32>
    %c0_15 = arith.constant 0 : index
    %c1_16 = arith.constant 1 : index
    %23 = memref.load %arg0[%c0_15, %c1_16] : memref<1x4xf32, #tpu.memory_space<smem>>
    %c5 = arith.constant 5 : index
    %c0_17 = arith.constant 0 : index
    %24 = vector.load %arg2[%c5, %c0_17] : memref<8x256xf32, #tpu.memory_space<vmem>>, vector<1x256xf32>
    %25 = vector.broadcast %23 : f32 to vector<1x256xf32>
    %26 = arith.mulf %25, %24 : vector<1x256xf32>
    %27 = arith.addf %22, %26 : vector<1x256xf32>
    %c0_18 = arith.constant 0 : index
    %c2_19 = arith.constant 2 : index
    %28 = memref.load %arg0[%c0_18, %c2_19] : memref<1x4xf32, #tpu.memory_space<smem>>
    %c6 = arith.constant 6 : index
    %c0_20 = arith.constant 0 : index
    %29 = vector.load %arg2[%c6, %c0_20] : memref<8x256xf32, #tpu.memory_space<vmem>>, vector<1x256xf32>
    %30 = vector.broadcast %28 : f32 to vector<1x256xf32>
    %31 = arith.mulf %30, %29 : vector<1x256xf32>
    %32 = arith.addf %27, %31 : vector<1x256xf32>
    %c0_21 = arith.constant 0 : index
    %c3_22 = arith.constant 3 : index
    %33 = memref.load %arg0[%c0_21, %c3_22] : memref<1x4xf32, #tpu.memory_space<smem>>
    %c7 = arith.constant 7 : index
    %c0_23 = arith.constant 0 : index
    %34 = vector.load %arg2[%c7, %c0_23] : memref<8x256xf32, #tpu.memory_space<vmem>>, vector<1x256xf32>
    %35 = vector.broadcast %33 : f32 to vector<1x256xf32>
    %36 = arith.mulf %35, %34 : vector<1x256xf32>
    %37 = arith.addf %32, %36 : vector<1x256xf32>
    %38 = tpu.concatenate %18, %37 in 0 : vector<1x256xf32>, vector<1x256xf32> -> vector<2x256xf32>
    %c0_24 = arith.constant 0 : index
    %c0_25 = arith.constant 0 : index
    %39 = vector.load %arg3[%c0_24, %c0_25] : memref<256x1024xf32, #tpu.memory_space<vmem>>, vector<256x1024xf32>
    %cst = arith.constant dense<0.000000e+00> : vector<2x1024xf32>
    %40 = tpu.matmul %38, %39, %cst {dimension_numbers = #tpu.dot_dimension_numbers<[1], [0], [0], [1], [0, 0, 1, 1], [], []>} : vector<2x256xf32>, vector<256x1024xf32>, vector<2x1024xf32> -> vector<2x1024xf32>
    %c0_26 = arith.constant 0 : index
    %41 = memref.load %arg1[%c0_26] : memref<1xf32, #tpu.memory_space<smem>>
    %42 = vector.broadcast %41 : f32 to vector<2x1024xf32>
    %43 = arith.addf %40, %42 : vector<2x1024xf32>
    %44 = arith.negf %43 : vector<2x1024xf32>
    %45 = math.exp %44 : vector<2x1024xf32>
    %cst_27 = arith.constant 1.000000e+00 : f32
    %46 = vector.broadcast %cst_27 : f32 to vector<2x1024xf32>
    %47 = arith.addf %46, %45 : vector<2x1024xf32>
    %48 = arith.divf %46, %47 : vector<2x1024xf32>
    %cst_28 = arith.constant 2.560000e+02 : f32
    %49 = vector.broadcast %cst_28 : f32 to vector<2x1024xf32>
    %50 = arith.mulf %49, %48 : vector<2x1024xf32>
    %c0_29 = arith.constant 0 : index
    %c0_30 = arith.constant 0 : index
    %51 = vector.load %arg4[%c0_29, %c0_30] : memref<2x1024xf32, #tpu.memory_space<vmem>>, vector<2x1024xf32>
    tpu.vector_store %arg4[%c0_29, %c0_30], %50 {strides = array<i32>} : memref<2x1024xf32, #tpu.memory_space<vmem>>, vector<2x1024xf32>,
    return
  }
}

</mosaic_0001>

<llo_original>
// kernel: tpu_custom_call.1
$region0: #{tpu_custom_call.1}
  #allocation0 [shape = 'u32[]', space=smem, size = 0x4, offset = 0x4, fixed_abs, tag = 'smem constant byte address 0x4 - core index']
  #allocation1 [shape = 'u32[144,128]{1,0:T(1,128)}', space=vmem, size = 0x12000, scoped, tag = 'internal scratch']
  #allocation2 [shape = 'f32[1]{0:T(128)S(6)}', space=smem, size = 0x200, scoped, tag = 'scoped memory for tpu_custom_call.1']
  %s0 = inlined_call_operand.vmem [shape: f32[1,4], index: 0, kind: input, shape index: {}]
  %s1 = inlined_call_operand.<no memory space> [shape: f32[1], index: 1, kind: input, shape index: {}]
  %s2 = inlined_call_operand.hbm [shape: f32[8,256], index: 2, kind: input, shape index: {}]
  %s3 = inlined_call_operand.hbm [shape: f32[256,1024], index: 3, kind: input, shape index: {}]
  %s4 = inlined_call_operand.hbm [shape: f32[2,1024], index: 4, kind: output, shape index: {}]
  %s5 = sld [smem:[#allocation0]]
  $region38: #{tpu_custom_call.1} parent=0
    _
  %s7 = ssub.s32 1, %s5
  %s8 = scalar_select 0, %s7, %s5
  %9 = sst [smem:[#allocation2]] %s1
  $region1: #{tpu_custom_call.1} parent=0
    #allocation3 [shape = 'u8[512]{0}', space=smem, size = 0x200, scoped, tag = 'input window, operand 0, single buffered']
    #allocation4 [shape = 's32[1]{0}', space=sflag, size = 0x4, scoped, tag = 'scoped memory for tpu_custom_call.1']
    #allocation5 [shape = 's32[1]{0}', space=sflag, size = 0x4, scoped, tag = 'scoped memory for tpu_custom_call.1']
    #allocation6 [shape = 's32[1]{0}', space=sflag, size = 0x4, scoped, tag = 'scoped memory for tpu_custom_call.1']
    #allocation7 [shape = 'u8[8192]{0}', space=vmem, size = 0x2000, scoped, tag = 'input window, operand 2, single buffered']
    #allocation8 [shape = 'u8[1048576]{0}', space=vmem, size = 0x100000, scoped, tag = 'input window, operand 3, single buffered']
    #allocation9 [shape = 's32[1]{0}', space=sflag, size = 0x4, scoped, tag = 'scoped memory for tpu_custom_call.1']
    #allocation10 [shape = 'u8[8192]{0}', space=vmem, size = 0x2000, scoped, tag = 'output window, operand 0, single buffered']
    %10 = vsyncpa [#allocation6], 0
    %11 = vsyncpa [#allocation4], 0
    %12 = vsyncpa [#allocation9], 0
    %13 = vsyncpa [#allocation5], 0
    // Predicated region
    $region2: #{tpu_custom_call.1} parent=1 // pred_check
      _
    $region3: #{tpu_custom_call.1} parent=1 // pred_check_branch
      %15 = sbr.rel (0) target = $region5
    $region4: #{tpu_custom_call.1} parent=1 // pred_region
      %s17 = ssub.s32 16, 16
      %18 = vsyncadd [#allocation6], %s17
      %s20 = sshll.u32 %s0, 4
      %s21 = int_to_ptr.vmem [resolvable:$true] %s20
      %23 = dma.vmem_to_smem %s21, 16, [#allocation3], [#allocation6]
    $region5: #{tpu_custom_call.1} parent=1 // pred_fallthru
      _
    // Predicated region
    $region6: #{tpu_custom_call.1} parent=1 // pred_check
      _
    $region7: #{tpu_custom_call.1} parent=1 // pred_check_branch
      %25 = sbr.rel (0) target = $region9
    $region8: #{tpu_custom_call.1} parent=1 // pred_region
      _
    $region9: #{tpu_custom_call.1} parent=1 // pred_fallthru
      _
    // Predicated region
    $region10: #{tpu_custom_call.1} parent=1 // pred_check
      _
    $region11: #{tpu_custom_call.1} parent=1 // pred_check_branch
      %27 = sbr.rel (0) target = $region13
    $region12: #{tpu_custom_call.1} parent=1 // pred_region
      %s29 = ssub.s32 256, 256
      %30 = vsyncadd [#allocation4], %s29
      %s32 = sshll.u32 [#allocation7], 4
      %s33 = int_to_ptr.vmem [resolvable:$true] %s32
      %35 = dma.hbm_to_vmem [thread:$0]  %s2, 256, %s33, [#allocation4]
    $region13: #{tpu_custom_call.1} parent=1 // pred_fallthru
      _
    // Predicated region
    $region14: #{tpu_custom_call.1} parent=1 // pred_check
      _
    $region15: #{tpu_custom_call.1} parent=1 // pred_check_branch
      %37 = sbr.rel (0) target = $region17
    $region16: #{tpu_custom_call.1} parent=1 // pred_region
      %s39 = ssub.s32 32768, 32768
      %40 = vsyncadd [#allocation9], %s39
      %s41 = sshll.u32 [#allocation8], 4
      %s42 = int_to_ptr.vmem [resolvable:$true] %s41
      %47 = dma.hbm_to_vmem [thread:$0]  %s3, 32768, %s42, [#allocation9], 1024, 1024, 64
    $region17: #{tpu_custom_call.1} parent=1 // pred_fallthru
      _
    // Predicated region
    $region18: #{tpu_custom_call.1} parent=1 // pred_check
      _
    $region19: #{tpu_custom_call.1} parent=1 // pred_check_branch
      %49 = sbr.rel (0) target = $region21
    $region20: #{tpu_custom_call.1} parent=1 // pred_region
      %50 = dma.done [#allocation6], 16
    $region21: #{tpu_custom_call.1} parent=1 // pred_fallthru
      _
    // Predicated region
    $region22: #{tpu_custom_call.1} parent=1 // pred_check
      _
    $region23: #{tpu_custom_call.1} parent=1 // pred_check_branch
      %52 = sbr.rel (0) target = $region25
    $region24: #{tpu_custom_call.1} parent=1 // pred_region
      %53 = dma.done [#allocation4], 256
    $region25: #{tpu_custom_call.1} parent=1 // pred_fallthru
      _
    // Predicated region
    $region26: #{tpu_custom_call.1} parent=1 // pred_check
      _
    $region27: #{tpu_custom_call.1} parent=1 // pred_check_branch
      %55 = sbr.rel (0) target = $region29
    $region28: #{tpu_custom_call.1} parent=1 // pred_region
      %56 = dma.done [#allocation9], 32768
    $region29: #{tpu_custom_call.1} parent=1 // pred_fallthru
      _
    %57 = sfence
    %s58 = sld [smem:[#allocation3]]
    %v59 = vld [vmem:[#allocation7] ss:$8 sm:$0x3]
    %v60 = vstv %s58
    %v61 = vmul.f32 %v60, %v59
    %s62 = sld [smem:[#allocation3 + $0x1]]
    %s63 = scalar_lea.vmem [#allocation7], 1
    %v64 = vld [vmem:[%s63] ss:$8 sm:$0x3]
    %v65 = vstv %s62
    %v66 = vmul.f32 %v65, %v64
    %v67 = vadd.f32 %v61, %v66
    %s68 = sld [smem:[#allocation3 + $0x2]]
    %s69 = scalar_lea.vmem [#allocation7], 2
    %v70 = vld [vmem:[%s69] ss:$8 sm:$0x3]
    %v71 = vstv %s68
    %v72 = vmul.f32 %v71, %v70
    %v73 = vadd.f32 %v67, %v72
    %s74 = sld [smem:[#allocation3 + $0x3]]
    %s75 = scalar_lea.vmem [#allocation7], 3
    %v76 = vld [vmem:[%s75] ss:$8 sm:$0x3]
    %v77 = vstv %s74
    %v78 = vmul.f32 %v77, %v76
    %v79 = vadd.f32 %v73, %v78
    %s80 = scalar_lea.vmem [#allocation7], 4
    %v81 = vld [vmem:[%s80] ss:$8 sm:$0x3]
    %v82 = vmul.f32 %v60, %v81
    %s83 = scalar_lea.vmem [#allocation7], 5
    %v84 = vld [vmem:[%s83] ss:$8 sm:$0x3]
    %v85 = vmul.f32 %v65, %v84
    %v86 = vadd.f32 %v82, %v85
    %s87 = scalar_lea.vmem [#allocation7], 6
    %v88 = vld [vmem:[%s87] ss:$8 sm:$0x3]
    %v89 = vmul.f32 %v71, %v88
    %v90 = vadd.f32 %v86, %v89
    %s91 = scalar_lea.vmem [#allocation7], 7
    %v92 = vld [vmem:[%s91] ss:$8 sm:$0x3]
    %v93 = vmul.f32 %v77, %v92
    %v94 = vadd.f32 %v90, %v93
    %v96 = vlaneseq
    %v97 = vshrl.u32 %v96, 7
    %v98 = vsub.s32 0, %v97
    %v99 = vrot.slane %v79, %v98
    %v100 = vlaneseq
    %v101 = vshrl.u32 %v100, 7
    %v102 = vsub.s32 1, %v101
    %v103 = vrot.slane %v79, %v102
    %v107 = vlaneseq
    %v108 = vshrl.u32 %v107, 7
    %v109 = vsub.s32 0, %v108
    %v110 = vrot.slane %v94, %v109
    %v111 = vlaneseq
    %v112 = vshrl.u32 %v111, 7
    %v113 = vsub.s32 1, %v112
    %v114 = vrot.slane %v94, %v113
    %vm117 = vcmask 1040384
    %v118 = vsel %vm117, %v99, %v110
    %v119 = vsel %vm117, %v103, %v114
    %v120 = vld [vmem:[#allocation8] sm:$0xff]
    %v121 = vld [vmem:[#allocation8 + $0x8] sm:$0xff]
    %v122 = vld [vmem:[#allocation8 + $0x10] sm:$0xff]
    %v123 = vld [vmem:[#allocation8 + $0x18] sm:$0xff]
    %v124 = vld [vmem:[#allocation8 + $0x20] sm:$0xff]
    %v125 = vld [vmem:[#allocation8 + $0x28] sm:$0xff]
    %v126 = vld [vmem:[#allocation8 + $0x30] sm:$0xff]
    %v127 = vld [vmem:[#allocation8 + $0x38] sm:$0xff]
    %v128 = vld [vmem:[#allocation8 + $0x40] sm:$0xff]
    %v129 = vld [vmem:[#allocation8 + $0x48] sm:$0xff]
    %v130 = vld [vmem:[#allocation8 + $0x50] sm:$0xff]
    %v131 = vld [vmem:[#allocation8 + $0x58] sm:$0xff]
    %v132 = vld [vmem:[#allocation8 + $0x60] sm:$0xff]
    %v133 = vld [vmem:[#allocation8 + $0x68] sm:$0xff]
    %v134 = vld [vmem:[#allocation8 + $0x70] sm:$0xff]
    %v135 = vld [vmem:[#allocation8 + $0x78] sm:$0xff]
    %v136 = vld [vmem:[#allocation8 + $0x80] sm:$0xff]
    %v137 = vld [vmem:[#allocation8 + $0x88] sm:$0xff]
    %v138 = vld [vmem:[#allocation8 + $0x90] sm:$0xff]
    %v139 = vld [vmem:[#allocation8 + $0x98] sm:$0xff]
    %v140 = vld [vmem:[#allocation8 + $0xa0] sm:$0xff]
    %v141 = vld [vmem:[#allocation8 + $0xa8] sm:$0xff]
    %v142 = vld [vmem:[#allocation8 + $0xb0] sm:$0xff]
    %v143 = vld [vmem:[#allocation8 + $0xb8] sm:$0xff]
    %v144 = vld [vmem:[#allocation8 + $0xc0] sm:$0xff]
    %v145 = vld [vmem:[#allocation8 + $0xc8] sm:$0xff]
    %v146 = vld [vmem:[#allocation8 + $0xd0] sm:$0xff]
    %v147 = vld [vmem:[#allocation8 + $0xd8] sm:$0xff]
    %v148 = vld [vmem:[#allocation8 + $0xe0] sm:$0xff]
    %v149 = vld [vmem:[#allocation8 + $0xe8] sm:$0xff]
    %v150 = vld [vmem:[#allocation8 + $0xf0] sm:$0xff]
    %v151 = vld [vmem:[#allocation8 + $0xf8] sm:$0xff]
    %v152 = vld [vmem:[#allocation8 + $0x100] sm:$0xff]
    %v153 = vld [vmem:[#allocation8 + $0x108] sm:$0xff]
    %v154 = vld [vmem:[#allocation8 + $0x110] sm:$0xff]
    %v155 = vld [vmem:[#allocation8 + $0x118] sm:$0xff]
    %v156 = vld [vmem:[#allocation8 + $0x120] sm:$0xff]
    %v157 = vld [vmem:[#allocation8 + $0x128] sm:$0xff]
    %v158 = vld [vmem:[#allocation8 + $0x130] sm:$0xff]
    %v159 = vld [vmem:[#allocation8 + $0x138] sm:$0xff]
    %v160 = vld [vmem:[#allocation8 + $0x140] sm:$0xff]
    %v161 = vld [vmem:[#allocation8 + $0x148] sm:$0xff]
    %v162 = vld [vmem:[#allocation8 + $0x150] sm:$0xff]
    %v163 = vld [vmem:[#allocation8 + $0x158] sm:$0xff]
    %v164 = vld [vmem:[#allocation8 + $0x160] sm:$0xff]
    %v165 = vld [vmem:[#allocation8 + $0x168] sm:$0xff]
    %v166 = vld [vmem:[#allocation8 + $0x170] sm:$0xff]
    %v167 = vld [vmem:[#allocation8 + $0x178] sm:$0xff]
    %v168 = vld [vmem:[#allocation8 + $0x180] sm:$0xff]
    %v169 = vld [vmem:[#allocation8 + $0x188] sm:$0xff]
    %v170 = vld [vmem:[#allocation8 + $0x190] sm:$0xff]
    %v171 = vld [vmem:[#allocation8 + $0x198] sm:$0xff]
    %v172 = vld [vmem:[#allocation8 + $0x1a0] sm:$0xff]
    %v173 = vld [vmem:[#allocation8 + $0x1a8] sm:$0xff]
    %v174 = vld [vmem:[#allocation8 + $0x1b0] sm:$0xff]
    %v175 = vld [vmem:[#allocation8 + $0x1b8] sm:$0xff]
    %v176 = vld [vmem:[#allocation8 + $0x1c0] sm:$0xff]
    %v177 = vld [vmem:[#allocation8 + $0x1c8] sm:$0xff]
    %v178 = vld [vmem:[#allocation8 + $0x1d0] sm:$0xff]
    %v179 = vld [vmem:[#allocation8 + $0x1d8] sm:$0xff]
    %v180 = vld [vmem:[#allocation8 + $0x1e0] sm:$0xff]
    %v181 = vld [vmem:[#allocation8 + $0x1e8] sm:$0xff]
    %v182 = vld [vmem:[#allocation8 + $0x1f0] sm:$0xff]
    %v183 = vld [vmem:[#allocation8 + $0x1f8] sm:$0xff]
    %v184 = vld [vmem:[#allocation8 + $0x200] sm:$0xff]
    %v185 = vld [vmem:[#allocation8 + $0x208] sm:$0xff]
    %v186 = vld [vmem:[#allocation8 + $0x210] sm:$0xff]
    %v187 = vld [vmem:[#allocation8 + $0x218] sm:$0xff]
    %v188 = vld [vmem:[#allocation8 + $0x220] sm:$0xff]
    %v189 = vld [vmem:[#allocation8 + $0x228] sm:$0xff]
    %v190 = vld [vmem:[#allocation8 + $0x230] sm:$0xff]
    %v191 = vld [vmem:[#allocation8 + $0x238] sm:$0xff]
    %v192 = vld [vmem:[#allocation8 + $0x240] sm:$0xff]
    %v193 = vld [vmem:[#allocation8 + $0x248] sm:$0xff]
    %v194 = vld [vmem:[#allocation8 + $0x250] sm:$0xff]
    %v195 = vld [vmem:[#allocation8 + $0x258] sm:$0xff]
    %v196 = vld [vmem:[#allocation8 + $0x260] sm:$0xff]
    %v197 = vld [vmem:[#allocation8 + $0x268] sm:$0xff]
    %v198 = vld [vmem:[#allocation8 + $0x270] sm:$0xff]
    %v199 = vld [vmem:[#allocation8 + $0x278] sm:$0xff]
    %v200 = vld [vmem:[#allocation8 + $0x280] sm:$0xff]
    %v201 = vld [vmem:[#allocation8 + $0x288] sm:$0xff]
    %v202 = vld [vmem:[#allocation8 + $0x290] sm:$0xff]
    %v203 = vld [vmem:[#allocation8 + $0x298] sm:$0xff]
    %v204 = vld [vmem:[#allocation8 + $0x2a0] sm:$0xff]
    %v205 = vld [vmem:[#allocation8 + $0x2a8] sm:$0xff]
    %v206 = vld [vmem:[#allocation8 + $0x2b0] sm:$0xff]
    %v207 = vld [vmem:[#allocation8 + $0x2b8] sm:$0xff]
    %v208 = vld [vmem:[#allocation8 + $0x2c0] sm:$0xff]
    %v209 = vld [vmem:[#allocation8 + $0x2c8] sm:$0xff]
    %v210 = vld [vmem:[#allocation8 + $0x2d0] sm:$0xff]
    %v211 = vld [vmem:[#allocation8 + $0x2d8] sm:$0xff]
    %v212 = vld [vmem:[#allocation8 + $0x2e0] sm:$0xff]
    %v213 = vld [vmem:[#allocation8 + $0x2e8] sm:$0xff]
    %v214 = vld [vmem:[#allocation8 + $0x2f0] sm:$0xff]
    %v215 = vld [vmem:[#allocation8 + $0x2f8] sm:$0xff]
    %v216 = vld [vmem:[#allocation8 + $0x300] sm:$0xff]
    %v217 = vld [vmem:[#allocation8 + $0x308] sm:$0xff]
    %v218 = vld [vmem:[#allocation8 + $0x310] sm:$0xff]
    %v219 = vld [vmem:[#allocation8 + $0x318] sm:$0xff]
    %v220 = vld [vmem:[#allocation8 + $0x320] sm:$0xff]
    %v221 = vld [vmem:[#allocation8 + $0x328] sm:$0xff]
    %v222 = vld [vmem:[#allocation8 + $0x330] sm:$0xff]
    %v223 = vld [vmem:[#allocation8 + $0x338] sm:$0xff]
    %v224 = vld [vmem:[#allocation8 + $0x340] sm:$0xff]
    %v225 = vld [vmem:[#allocation8 + $0x348] sm:$0xff]
    %v226 = vld [vmem:[#allocation8 + $0x350] sm:$0xff]
    %v227 = vld [vmem:[#allocation8 + $0x358] sm:$0xff]
    %v228 = vld [vmem:[#allocation8 + $0x360] sm:$0xff]
    %v229 = vld [vmem:[#allocation8 + $0x368] sm:$0xff]
    %v230 = vld [vmem:[#allocation8 + $0x370] sm:$0xff]
    %v231 = vld [vmem:[#allocation8 + $0x378] sm:$0xff]
    %v232 = vld [vmem:[#allocation8 + $0x380] sm:$0xff]
    %v233 = vld [vmem:[#allocation8 + $0x388] sm:$0xff]
    %v234 = vld [vmem:[#allocation8 + $0x390] sm:$0xff]
    %v235 = vld [vmem:[#allocation8 + $0x398] sm:$0xff]
    %v236 = vld [vmem:[#allocation8 + $0x3a0] sm:$0xff]
    %v237 = vld [vmem:[#allocation8 + $0x3a8] sm:$0xff]
    %v238 = vld [vmem:[#allocation8 + $0x3b0] sm:$0xff]
    %v239 = vld [vmem:[#allocation8 + $0x3b8] sm:$0xff]
    %v240 = vld [vmem:[#allocation8 + $0x3c0] sm:$0xff]
    %v241 = vld [vmem:[#allocation8 + $0x3c8] sm:$0xff]
    %v242 = vld [vmem:[#allocation8 + $0x3d0] sm:$0xff]
    %v243 = vld [vmem:[#allocation8 + $0x3d8] sm:$0xff]
    %v244 = vld [vmem:[#allocation8 + $0x3e0] sm:$0xff]
    %v245 = vld [vmem:[#allocation8 + $0x3e8] sm:$0xff]
    %v246 = vld [vmem:[#allocation8 + $0x3f0] sm:$0xff]
    %v247 = vld [vmem:[#allocation8 + $0x3f8] sm:$0xff]
    %v248 = vld [vmem:[#allocation8 + $0x400] sm:$0xff]
    %v249 = vld [vmem:[#allocation8 + $0x408] sm:$0xff]
    %v250 = vld [vmem:[#allocation8 + $0x410] sm:$0xff]
    %v251 = vld [vmem:[#allocation8 + $0x418] sm:$0xff]
    %v252 = vld [vmem:[#allocation8 + $0x420] sm:$0xff]
    %v253 = vld [vmem:[#allocation8 + $0x428] sm:$0xff]
    %v254 = vld [vmem:[#allocation8 + $0x430] sm:$0xff]
    %v255 = vld [vmem:[#allocation8 + $0x438] sm:$0xff]
    %v256 = vld [vmem:[#allocation8 + $0x440] sm:$0xff]
    %v257 = vld [vmem:[#allocation8 + $0x448] sm:$0xff]
    %v258 = vld [vmem:[#allocation8 + $0x450] sm:$0xff]
    %v259 = vld [vmem:[#allocation8 + $0x458] sm:$0xff]
    %v260 = vld [vmem:[#allocation8 + $0x460] sm:$0xff]
    %v261 = vld [vmem:[#allocation8 + $0x468] sm:$0xff]
    %v262 = vld [vmem:[#allocation8 + $0x470] sm:$0xff]
    %v263 = vld [vmem:[#allocation8 + $0x478] sm:$0xff]
    %v264 = vld [vmem:[#allocation8 + $0x480] sm:$0xff]
    %v265 = vld [vmem:[#allocation8 + $0x488] sm:$0xff]
    %v266 = vld [vmem:[#allocation8 + $0x490] sm:$0xff]
    %v267 = vld [vmem:[#allocation8 + $0x498] sm:$0xff]
    %v268 = vld [vmem:[#allocation8 + $0x4a0] sm:$0xff]
    %v269 = vld [vmem:[#allocation8 + $0x4a8] sm:$0xff]
    %v270 = vld [vmem:[#allocation8 + $0x4b0] sm:$0xff]
    %v271 = vld [vmem:[#allocation8 + $0x4b8] sm:$0xff]
    %v272 = vld [vmem:[#allocation8 + $0x4c0] sm:$0xff]
    %v273 = vld [vmem:[#allocation8 + $0x4c8] sm:$0xff]
    %v274 = vld [vmem:[#allocation8 + $0x4d0] sm:$0xff]
    %v275 = vld [vmem:[#allocation8 + $0x4d8] sm:$0xff]
    %v276 = vld [vmem:[#allocation8 + $0x4e0] sm:$0xff]
    %v277 = vld [vmem:[#allocation8 + $0x4e8] sm:$0xff]
    %v278 = vld [vmem:[#allocation8 + $0x4f0] sm:$0xff]
    %v279 = vld [vmem:[#allocation8 + $0x4f8] sm:$0xff]
    %v280 = vld [vmem:[#allocation8 + $0x500] sm:$0xff]
    %v281 = vld [vmem:[#allocation8 + $0x508] sm:$0xff]
    %v282 = vld [vmem:[#allocation8 + $0x510] sm:$0xff]
    %v283 = vld [vmem:[#allocation8 + $0x518] sm:$0xff]
    %v284 = vld [vmem:[#allocation8 + $0x520] sm:$0xff]
    %v285 = vld [vmem:[#allocation8 + $0x528] sm:$0xff]
    %v286 = vld [vmem:[#allocation8 + $0x530] sm:$0xff]
    %v287 = vld [vmem:[#allocation8 + $0x538] sm:$0xff]
    %v288 = vld [vmem:[#allocation8 + $0x540] sm:$0xff]
    %v289 = vld [vmem:[#allocation8 + $0x548] sm:$0xff]
    %v290 = vld [vmem:[#allocation8 + $0x550] sm:$0xff]
    %v291 = vld [vmem:[#allocation8 + $0x558] sm:$0xff]
    %v292 = vld [vmem:[#allocation8 + $0x560] sm:$0xff]
    %v293 = vld [vmem:[#allocation8 + $0x568] sm:$0xff]
    %v294 = vld [vmem:[#allocation8 + $0x570] sm:$0xff]
    %v295 = vld [vmem:[#allocation8 + $0x578] sm:$0xff]
    %v296 = vld [vmem:[#allocation8 + $0x580] sm:$0xff]
    %v297 = vld [vmem:[#allocation8 + $0x588] sm:$0xff]
    %v298 = vld [vmem:[#allocation8 + $0x590] sm:$0xff]
    %v299 = vld [vmem:[#allocation8 + $0x598] sm:$0xff]
    %v300 = vld [vmem:[#allocation8 + $0x5a0] sm:$0xff]
    %v301 = vld [vmem:[#allocation8 + $0x5a8] sm:$0xff]
    %v302 = vld [vmem:[#allocation8 + $0x5b0] sm:$0xff]
    %v303 = vld [vmem:[#allocation8 + $0x5b8] sm:$0xff]
    %v304 = vld [vmem:[#allocation8 + $0x5c0] sm:$0xff]
    %v305 = vld [vmem:[#allocation8 + $0x5c8] sm:$0xff]
    %v306 = vld [vmem:[#allocation8 + $0x5d0] sm:$0xff]
    %v307 = vld [vmem:[#allocation8 + $0x5d8] sm:$0xff]
    %v308 = vld [vmem:[#allocation8 + $0x5e0] sm:$0xff]
    %v309 = vld [vmem:[#allocation8 + $0x5e8] sm:$0xff]
    %v310 = vld [vmem:[#allocation8 + $0x5f0] sm:$0xff]
    %v311 = vld [vmem:[#allocation8 + $0x5f8] sm:$0xff]
    %v312 = vld [vmem:[#allocation8 + $0x600] sm:$0xff]
    %v313 = vld [vmem:[#allocation8 + $0x608] sm:$0xff]
    %v314 = vld [vmem:[#allocation8 + $0x610] sm:$0xff]
    %v315 = vld [vmem:[#allocation8 + $0x618] sm:$0xff]
    %v316 = vld [vmem:[#allocation8 + $0x620] sm:$0xff]
    %v317 = vld [vmem:[#allocation8 + $0x628] sm:$0xff]
    %v318 = vld [vmem:[#allocation8 + $0x630] sm:$0xff]
    %v319 = vld [vmem:[#allocation8 + $0x638] sm:$0xff]
    %v320 = vld [vmem:[#allocation8 + $0x640] sm:$0xff]
    %v321 = vld [vmem:[#allocation8 + $0x648] sm:$0xff]
    %v322 = vld [vmem:[#allocation8 + $0x650] sm:$0xff]
    %v323 = vld [vmem:[#allocation8 + $0x658] sm:$0xff]
    %v324 = vld [vmem:[#allocation8 + $0x660] sm:$0xff]
    %v325 = vld [vmem:[#allocation8 + $0x668] sm:$0xff]
    %v326 = vld [vmem:[#allocation8 + $0x670] sm:$0xff]
    %v327 = vld [vmem:[#allocation8 + $0x678] sm:$0xff]
    %v328 = vld [vmem:[#allocation8 + $0x680] sm:$0xff]
    %v329 = vld [vmem:[#allocation8 + $0x688] sm:$0xff]
    %v330 = vld [vmem:[#allocation8 + $0x690] sm:$0xff]
    %v331 = vld [vmem:[#allocation8 + $0x698] sm:$0xff]
    %v332 = vld [vmem:[#allocation8 + $0x6a0] sm:$0xff]
    %v333 = vld [vmem:[#allocation8 + $0x6a8] sm:$0xff]
    %v334 = vld [vmem:[#allocation8 + $0x6b0] sm:$0xff]
    %v335 = vld [vmem:[#allocation8 + $0x6b8] sm:$0xff]
    %v336 = vld [vmem:[#allocation8 + $0x6c0] sm:$0xff]
    %v337 = vld [vmem:[#allocation8 + $0x6c8] sm:$0xff]
    %v338 = vld [vmem:[#allocation8 + $0x6d0] sm:$0xff]
    %v339 = vld [vmem:[#allocation8 + $0x6d8] sm:$0xff]
    %v340 = vld [vmem:[#allocation8 + $0x6e0] sm:$0xff]
    %v341 = vld [vmem:[#allocation8 + $0x6e8] sm:$0xff]
    %v342 = vld [vmem:[#allocation8 + $0x6f0] sm:$0xff]
    %v343 = vld [vmem:[#allocation8 + $0x6f8] sm:$0xff]
    %v344 = vld [vmem:[#allocation8 + $0x700] sm:$0xff]
    %v345 = vld [vmem:[#allocation8 + $0x708] sm:$0xff]
    %v346 = vld [vmem:[#allocation8 + $0x710] sm:$0xff]
    %v347 = vld [vmem:[#allocation8 + $0x718] sm:$0xff]
    %v348 = vld [vmem:[#allocation8 + $0x720] sm:$0xff]
    %v349 = vld [vmem:[#allocation8 + $0x728] sm:$0xff]
    %v350 = vld [vmem:[#allocation8 + $0x730] sm:$0xff]
    %v351 = vld [vmem:[#allocation8 + $0x738] sm:$0xff]
    %v352 = vld [vmem:[#allocation8 + $0x740] sm:$0xff]
    %v353 = vld [vmem:[#allocation8 + $0x748] sm:$0xff]
    %v354 = vld [vmem:[#allocation8 + $0x750] sm:$0xff]
    %v355 = vld [vmem:[#allocation8 + $0x758] sm:$0xff]
    %v356 = vld [vmem:[#allocation8 + $0x760] sm:$0xff]
    %v357 = vld [vmem:[#allocation8 + $0x768] sm:$0xff]
    %v358 = vld [vmem:[#allocation8 + $0x770] sm:$0xff]
    %v359 = vld [vmem:[#allocation8 + $0x778] sm:$0xff]
    %v360 = vld [vmem:[#allocation8 + $0x780] sm:$0xff]
    %v361 = vld [vmem:[#allocation8 + $0x788] sm:$0xff]
    %v362 = vld [vmem:[#allocation8 + $0x790] sm:$0xff]
    %v363 = vld [vmem:[#allocation8 + $0x798] sm:$0xff]
    %v364 = vld [vmem:[#allocation8 + $0x7a0] sm:$0xff]
    %v365 = vld [vmem:[#allocation8 + $0x7a8] sm:$0xff]
    %v366 = vld [vmem:[#allocation8 + $0x7b0] sm:$0xff]
    %v367 = vld [vmem:[#allocation8 + $0x7b8] sm:$0xff]
    %v368 = vld [vmem:[#allocation8 + $0x7c0] sm:$0xff]
    %v369 = vld [vmem:[#allocation8 + $0x7c8] sm:$0xff]
    %v370 = vld [vmem:[#allocation8 + $0x7d0] sm:$0xff]
    %v371 = vld [vmem:[#allocation8 + $0x7d8] sm:$0xff]
    %v372 = vld [vmem:[#allocation8 + $0x7e0] sm:$0xff]
    %v373 = vld [vmem:[#allocation8 + $0x7e8] sm:$0xff]
    %v374 = vld [vmem:[#allocation8 + $0x7f0] sm:$0xff]
    %v375 = vld [vmem:[#allocation8 + $0x7f8] sm:$0xff]
    %s376 = sld [smem:[#allocation2]]
    %v377 = vstv %s376
    %378 = vmatprep.subr.mxu0 %v121
    %379 = vmatpush1.msra.mxu0 %v120
    %380 = vmatprep.subr.mxu0 %v129
    %381 = vmatpush1.msra.mxu0 %v128
    %382 = vmatprep.subr.mxu0 %v137
    %383 = vmatpush1.msra.mxu0 %v136
    %384 = vmatprep.subr.mxu0 %v145
    %385 = vmatpush1.msra.mxu0 %v144
    %386 = vmatprep.subr.mxu0 %v153
    %387 = vmatpush1.msra.mxu0 %v152
    %388 = vmatprep.subr.mxu0 %v161
    %389 = vmatpush1.msra.mxu0 %v160
    %390 = vmatprep.subr.mxu0 %v169
    %391 = vmatpush1.msra.mxu0 %v168
    %392 = vmatprep.subr.mxu0 %v177
    %393 = vmatpush1.msra.mxu0 %v176
    %394 = vmatprep.subr.mxu0 %v185
    %395 = vmatpush1.msra.mxu0 %v184
    %396 = vmatprep.subr.mxu0 %v193
    %397 = vmatpush1.msra.mxu0 %v192
    %398 = vmatprep.subr.mxu0 %v201
    %399 = vmatpush1.msra.mxu0 %v200
    %400 = vmatprep.subr.mxu0 %v209
    %401 = vmatpush1.msra.mxu0 %v208
    %402 = vmatprep.subr.mxu0 %v217
    %403 = vmatpush1.msra.mxu0 %v216
    %404 = vmatprep.subr.mxu0 %v225
    %405 = vmatpush1.msra.mxu0 %v224
    %406 = vmatprep.subr.mxu0 %v233
    %407 = vmatpush1.msra.mxu0 %v232
    %408 = vmatprep.subr.mxu0 %v241
    %409 = vmatpush1.msra.mxu0 %v240
    %410 = vmatprep.subr.mxu0 %v249
    %411 = vmatpush1.msra.mxu0 %v248
    %412 = vmatprep.subr.mxu0 %v257
    %413 = vmatpush1.msra.mxu0 %v256
    %414 = vmatprep.subr.mxu0 %v265
    %415 = vmatpush1.msra.mxu0 %v264
    %416 = vmatprep.subr.mxu0 %v273
    %417 = vmatpush1.msra.mxu0 %v272
    %418 = vmatprep.subr.mxu0 %v281
    %419 = vmatpush1.msra.mxu0 %v280
    %420 = vmatprep.subr.mxu0 %v289
    %421 = vmatpush1.msra.mxu0 %v288
    %422 = vmatprep.subr.mxu0 %v297
    %423 = vmatpush1.msra.mxu0 %v296
    %424 = vmatprep.subr.mxu0 %v305
    %425 = vmatpush1.msra.mxu0 %v304
    %426 = vmatprep.subr.mxu0 %v313
    %427 = vmatpush1.msra.mxu0 %v312
    %428 = vmatprep.subr.mxu0 %v321
    %429 = vmatpush1.msra.mxu0 %v320
    %430 = vmatprep.subr.mxu0 %v329
    %431 = vmatpush1.msra.mxu0 %v328
    %432 = vmatprep.subr.mxu0 %v337
    %433 = vmatpush1.msra.mxu0 %v336
    %434 = vmatprep.subr.mxu0 %v345
    %435 = vmatpush1.msra.mxu0 %v344
    %436 = vmatprep.subr.mxu0 %v353
    %437 = vmatpush1.msra.mxu0 %v352
    %438 = vmatprep.subr.mxu0 %v361
    %439 = vmatpush1.msra.mxu0 %v360
    %440 = vmatprep.subr.mxu0 %v369
    %441 = vmatpush1.msra.mxu0 %v368
    %442 = vmatprep.mubr.f32.mxu0 %v119
    %443 = vmatmul.mubr.f32.gmra.mrb[0].mxu0 %v118
    %v444 = vpop.f32.mrb[0].mxu0
    %v445 = vadd.f32 %v377, %v444
    %v446 = vpop.f32.mrb[0].mxu0
    %v447 = vadd.f32 %v377, %v446
    %448 = vdwg.mxu0
    %449 = vmatprep.subr.mxu0 %v123
    %450 = vmatpush1.msra.mxu0 %v122
    %451 = vmatprep.subr.mxu0 %v131
    %452 = vmatpush1.msra.mxu0 %v130
    %453 = vmatprep.subr.mxu0 %v139
    %454 = vmatpush1.msra.mxu0 %v138
    %455 = vmatprep.subr.mxu0 %v147
    %456 = vmatpush1.msra.mxu0 %v146
    %457 = vmatprep.subr.mxu0 %v155
    %458 = vmatpush1.msra.mxu0 %v154
    %459 = vmatprep.subr.mxu0 %v163
    %460 = vmatpush1.msra.mxu0 %v162
    %461 = vmatprep.subr.mxu0 %v171
    %462 = vmatpush1.msra.mxu0 %v170
    %463 = vmatprep.subr.mxu0 %v179
    %464 = vmatpush1.msra.mxu0 %v178
    %465 = vmatprep.subr.mxu0 %v187
    %466 = vmatpush1.msra.mxu0 %v186
    %467 = vmatprep.subr.mxu0 %v195
    %468 = vmatpush1.msra.mxu0 %v194
    %469 = vmatprep.subr.mxu0 %v203
    %470 = vmatpush1.msra.mxu0 %v202
    %471 = vmatprep.subr.mxu0 %v211
    %472 = vmatpush1.msra.mxu0 %v210
    %473 = vmatprep.subr.mxu0 %v219
    %474 = vmatpush1.msra.mxu0 %v218
    %475 = vmatprep.subr.mxu0 %v227
    %476 = vmatpush1.msra.mxu0 %v226
    %477 = vmatprep.subr.mxu0 %v235
    %478 = vmatpush1.msra.mxu0 %v234
    %479 = vmatprep.subr.mxu0 %v243
    %480 = vmatpush1.msra.mxu0 %v242
    %481 = vmatprep.subr.mxu0 %v251
    %482 = vmatpush1.msra.mxu0 %v250
    %483 = vmatprep.subr.mxu0 %v259
    %484 = vmatpush1.msra.mxu0 %v258
    %485 = vmatprep.subr.mxu0 %v267
    %486 = vmatpush1.msra.mxu0 %v266
    %487 = vmatprep.subr.mxu0 %v275
    %488 = vmatpush1.msra.mxu0 %v274
    %489 = vmatprep.subr.mxu0 %v283
    %490 = vmatpush1.msra.mxu0 %v282
    %491 = vmatprep.subr.mxu0 %v291
    %492 = vmatpush1.msra.mxu0 %v290
    %493 = vmatprep.subr.mxu0 %v299
    %494 = vmatpush1.msra.mxu0 %v298
    %495 = vmatprep.subr.mxu0 %v307
    %496 = vmatpush1.msra.mxu0 %v306
    %497 = vmatprep.subr.mxu0 %v315
    %498 = vmatpush1.msra.mxu0 %v314
    %499 = vmatprep.subr.mxu0 %v323
    %500 = vmatpush1.msra.mxu0 %v322
    %501 = vmatprep.subr.mxu0 %v331
    %502 = vmatpush1.msra.mxu0 %v330
    %503 = vmatprep.subr.mxu0 %v339
    %504 = vmatpush1.msra.mxu0 %v338
    %505 = vmatprep.subr.mxu0 %v347
    %506 = vmatpush1.msra.mxu0 %v346
    %507 = vmatprep.subr.mxu0 %v355
    %508 = vmatpush1.msra.mxu0 %v354
    %509 = vmatprep.subr.mxu0 %v363
    %510 = vmatpush1.msra.mxu0 %v362
    %511 = vmatprep.subr.mxu0 %v371
    %512 = vmatpush1.msra.mxu0 %v370
    %513 = vmatprep.mubr.f32.mxu0 %v119
    %514 = vmatmul.mubr.f32.gmra.mrb[0].mxu0 %v118
    %v515 = vpop.f32.mrb[0].mxu0
    %v516 = vadd.f32 %v377, %v515
    %v517 = vpop.f32.mrb[0].mxu0
    %v518 = vadd.f32 %v377, %v517
    %519 = vdwg.mxu0
    %520 = vmatprep.subr.mxu0 %v125
    %521 = vmatpush1.msra.mxu0 %v124
    %522 = vmatprep.subr.mxu0 %v133
    %523 = vmatpush1.msra.mxu0 %v132
    %524 = vmatprep.subr.mxu0 %v141
    %525 = vmatpush1.msra.mxu0 %v140
    %526 = vmatprep.subr.mxu0 %v149
    %527 = vmatpush1.msra.mxu0 %v148
    %528 = vmatprep.subr.mxu0 %v157
    %529 = vmatpush1.msra.mxu0 %v156
    %530 = vmatprep.subr.mxu0 %v165
    %531 = vmatpush1.msra.mxu0 %v164
    %532 = vmatprep.subr.mxu0 %v173
    %533 = vmatpush1.msra.mxu0 %v172
    %534 = vmatprep.subr.mxu0 %v181
    %535 = vmatpush1.msra.mxu0 %v180
    %536 = vmatprep.subr.mxu0 %v189
    %537 = vmatpush1.msra.mxu0 %v188
    %538 = vmatprep.subr.mxu0 %v197
    %539 = vmatpush1.msra.mxu0 %v196
    %540 = vmatprep.subr.mxu0 %v205
    %541 = vmatpush1.msra.mxu0 %v204
    %542 = vmatprep.subr.mxu0 %v213
    %543 = vmatpush1.msra.mxu0 %v212
    %544 = vmatprep.subr.mxu0 %v221
    %545 = vmatpush1.msra.mxu0 %v220
    %546 = vmatprep.subr.mxu0 %v229
    %547 = vmatpush1.msra.mxu0 %v228
    %548 = vmatprep.subr.mxu0 %v237
    %549 = vmatpush1.msra.mxu0 %v236
    %550 = vmatprep.subr.mxu0 %v245
    %551 = vmatpush1.msra.mxu0 %v244
    %552 = vmatprep.subr.mxu0 %v253
    %553 = vmatpush1.msra.mxu0 %v252
    %554 = vmatprep.subr.mxu0 %v261
    %555 = vmatpush1.msra.mxu0 %v260
    %556 = vmatprep.subr.mxu0 %v269
    %557 = vmatpush1.msra.mxu0 %v268
    %558 = vmatprep.subr.mxu0 %v277
    %559 = vmatpush1.msra.mxu0 %v276
    %560 = vmatprep.subr.mxu0 %v285
    %561 = vmatpush1.msra.mxu0 %v284
    %562 = vmatprep.subr.mxu0 %v293
    %563 = vmatpush1.msra.mxu0 %v292
    %564 = vmatprep.subr.mxu0 %v301
    %565 = vmatpush1.msra.mxu0 %v300
    %566 = vmatprep.subr.mxu0 %v309
    %567 = vmatpush1.msra.mxu0 %v308
    %568 = vmatprep.subr.mxu0 %v317
    %569 = vmatpush1.msra.mxu0 %v316
    %570 = vmatprep.subr.mxu0 %v325
    %571 = vmatpush1.msra.mxu0 %v324
    %572 = vmatprep.subr.mxu0 %v333
    %573 = vmatpush1.msra.mxu0 %v332
    %574 = vmatprep.subr.mxu0 %v341
    %575 = vmatpush1.msra.mxu0 %v340
    %576 = vmatprep.subr.mxu0 %v349
    %577 = vmatpush1.msra.mxu0 %v348
    %578 = vmatprep.subr.mxu0 %v357
    %579 = vmatpush1.msra.mxu0 %v356
    %580 = vmatprep.subr.mxu0 %v365
    %581 = vmatpush1.msra.mxu0 %v364
    %582 = vmatprep.subr.mxu0 %v373
    %583 = vmatpush1.msra.mxu0 %v372
    %584 = vmatprep.mubr.f32.mxu0 %v119
    %585 = vmatmul.mubr.f32.gmra.mrb[0].mxu0 %v118
    %v586 = vpop.f32.mrb[0].mxu0
    %v587 = vadd.f32 %v377, %v586
    %v588 = vpop.f32.mrb[0].mxu0
    %v589 = vadd.f32 %v377, %v588
    %590 = vdwg.mxu0
    %591 = vmatprep.subr.mxu0 %v127
    %592 = vmatpush1.msra.mxu0 %v126
    %593 = vmatprep.subr.mxu0 %v135
    %594 = vmatpush1.msra.mxu0 %v134
    %595 = vmatprep.subr.mxu0 %v143
    %596 = vmatpush1.msra.mxu0 %v142
    %597 = vmatprep.subr.mxu0 %v151
    %598 = vmatpush1.msra.mxu0 %v150
    %599 = vmatprep.subr.mxu0 %v159
    %600 = vmatpush1.msra.mxu0 %v158
    %601 = vmatprep.subr.mxu0 %v167
    %602 = vmatpush1.msra.mxu0 %v166
    %603 = vmatprep.subr.mxu0 %v175
    %604 = vmatpush1.msra.mxu0 %v174
    %605 = vmatprep.subr.mxu0 %v183
    %606 = vmatpush1.msra.mxu0 %v182
    %607 = vmatprep.subr.mxu0 %v191
    %608 = vmatpush1.msra.mxu0 %v190
    %609 = vmatprep.subr.mxu0 %v199
    %610 = vmatpush1.msra.mxu0 %v198
    %611 = vmatprep.subr.mxu0 %v207
    %612 = vmatpush1.msra.mxu0 %v206
    %613 = vmatprep.subr.mxu0 %v215
    %614 = vmatpush1.msra.mxu0 %v214
    %615 = vmatprep.subr.mxu0 %v223
    %616 = vmatpush1.msra.mxu0 %v222
    %617 = vmatprep.subr.mxu0 %v231
    %618 = vmatpush1.msra.mxu0 %v230
    %619 = vmatprep.subr.mxu0 %v239
    %620 = vmatpush1.msra.mxu0 %v238
    %621 = vmatprep.subr.mxu0 %v247
    %622 = vmatpush1.msra.mxu0 %v246
    %623 = vmatprep.subr.mxu0 %v255
    %624 = vmatpush1.msra.mxu0 %v254
    %625 = vmatprep.subr.mxu0 %v263
    %626 = vmatpush1.msra.mxu0 %v262
    %627 = vmatprep.subr.mxu0 %v271
    %628 = vmatpush1.msra.mxu0 %v270
    %629 = vmatprep.subr.mxu0 %v279
    %630 = vmatpush1.msra.mxu0 %v278
    %631 = vmatprep.subr.mxu0 %v287
    %632 = vmatpush1.msra.mxu0 %v286
    %633 = vmatprep.subr.mxu0 %v295
    %634 = vmatpush1.msra.mxu0 %v294
    %635 = vmatprep.subr.mxu0 %v303
    %636 = vmatpush1.msra.mxu0 %v302
    %637 = vmatprep.subr.mxu0 %v311
    %638 = vmatpush1.msra.mxu0 %v310
    %639 = vmatprep.subr.mxu0 %v319
    %640 = vmatpush1.msra.mxu0 %v318
    %641 = vmatprep.subr.mxu0 %v327
    %642 = vmatpush1.msra.mxu0 %v326
    %643 = vmatprep.subr.mxu0 %v335
    %644 = vmatpush1.msra.mxu0 %v334
    %645 = vmatprep.subr.mxu0 %v343
    %646 = vmatpush1.msra.mxu0 %v342
    %647 = vmatprep.subr.mxu0 %v351
    %648 = vmatpush1.msra.mxu0 %v350
    %649 = vmatprep.subr.mxu0 %v359
    %650 = vmatpush1.msra.mxu0 %v358
    %651 = vmatprep.subr.mxu0 %v367
    %652 = vmatpush1.msra.mxu0 %v366
    %653 = vmatprep.subr.mxu0 %v375
    %654 = vmatpush1.msra.mxu0 %v374
    %655 = vmatprep.mubr.f32.mxu0 %v119
    %656 = vmatmul.mubr.f32.gmra.mrb[0].mxu0 %v118
    %v657 = vpop.f32.mrb[0].mxu0
    %v658 = vadd.f32 %v377, %v657
    %v659 = vpop.f32.mrb[0].mxu0
    %v660 = vadd.f32 %v377, %v659
    %661 = vdwg.mxu0
    %v662 = vxor.u32 %v445, 2147483648
    %v663 = vxor.u32 %v447, 2147483648
    %v664 = vxor.u32 %v516, 2147483648
    %v665 = vxor.u32 %v518, 2147483648
    %v666 = vxor.u32 %v587, 2147483648
    %v667 = vxor.u32 %v589, 2147483648
    %v668 = vxor.u32 %v658, 2147483648
    %v669 = vxor.u32 %v660, 2147483648
    %v670 = vmul.f32 %v662, 1.442695
    %v671 = vpow.pop %v670
    %v672 = vmul.f32 %v663, 1.442695
    %v673 = vpow.pop %v672
    %v674 = vmul.f32 %v664, 1.442695
    %v675 = vpow.pop %v674
    %v676 = vmul.f32 %v665, 1.442695
    %v677 = vpow.pop %v676
    %v678 = vmul.f32 %v666, 1.442695
    %v679 = vpow.pop %v678
    %v680 = vmul.f32 %v667, 1.442695
    %v681 = vpow.pop %v680
    %v682 = vmul.f32 %v668, 1.442695
    %v683 = vpow.pop %v682
    %v684 = vmul.f32 %v669, 1.442695
    %v685 = vpow.pop %v684
    %v686 = vadd.f32 %v671, 1.0
    %v687 = vadd.f32 %v673, 1.0
    %v688 = vadd.f32 %v675, 1.0
    %v689 = vadd.f32 %v677, 1.0
    %v690 = vadd.f32 %v679, 1.0
    %v691 = vadd.f32 %v681, 1.0
    %v692 = vadd.f32 %v683, 1.0
    %v693 = vadd.f32 %v685, 1.0
    %v694 = vrcp.pop %v686
    %v695 = vmul.f32 1.0, %v694
    %v696 = vrcp.pop %v687
    %v697 = vmul.f32 1.0, %v696
    %v698 = vrcp.pop %v688
    %v699 = vmul.f32 1.0, %v698
    %v700 = vrcp.pop %v689
    %v701 = vmul.f32 1.0, %v700
    %v702 = vrcp.pop %v690
    %v703 = vmul.f32 1.0, %v702
    %v704 = vrcp.pop %v691
    %v705 = vmul.f32 1.0, %v704
    %v706 = vrcp.pop %v692
    %v707 = vmul.f32 1.0, %v706
    %v708 = vrcp.pop %v693
    %v709 = vmul.f32 1.0, %v708
    %v710 = vmul.f32 %v695, 256.0
    %v711 = vmul.f32 %v697, 256.0
    %v712 = vmul.f32 %v699, 256.0
    %v713 = vmul.f32 %v701, 256.0
    %v714 = vmul.f32 %v703, 256.0
    %v715 = vmul.f32 %v705, 256.0
    %v716 = vmul.f32 %v707, 256.0
    %v717 = vmul.f32 %v709, 256.0
    %v726 = vcombine.low %v710, %v711
    %v727 = vcombine.low %v712, %v713
    %v729 = vunpack.c.l.s4 1983009808
    %v730 = vunpack.c.0.s8 %v729
    %v731 = vlaneseq
    %v732 = vshrl.u32 %v731, 7
    %v733 = vsub.s32 %v730, %v732
    %v734 = vrot.slane %v726, %v733
    %v736 = vunpack.c.l.s4 1983009808
    %v737 = vunpack.c.0.s8 %v736
    %v738 = vlaneseq
    %v739 = vshrl.u32 %v738, 7
    %v740 = vsub.s32 %v737, %v739
    %v741 = vrot.slane %v727, %v740
    %v742 = vcombine.low %v734, %v741
    %v743 = vcombine.low %v714, %v715
    %v744 = vcombine.low %v716, %v717
    %v746 = vunpack.c.l.s4 1983009808
    %v747 = vunpack.c.0.s8 %v746
    %v748 = vlaneseq
    %v749 = vshrl.u32 %v748, 7
    %v750 = vsub.s32 %v747, %v749
    %v751 = vrot.slane %v743, %v750
    %v753 = vunpack.c.l.s4 1983009808
    %v754 = vunpack.c.0.s8 %v753
    %v755 = vlaneseq
    %v756 = vshrl.u32 %v755, 7
    %v757 = vsub.s32 %v754, %v756
    %v758 = vrot.slane %v744, %v757
    %v759 = vcombine.low %v751, %v758
    %762 = vst [vmem:[#allocation10] sm:$0xff] %v742
    %763 = vst [vmem:[#allocation10 + $0x8] sm:$0xff] %v759
    // Predicated region
    $region30: #{tpu_custom_call.1} parent=1 // pred_check
      _
    $region31: #{tpu_custom_call.1} parent=1 // pred_check_branch
      %765 = sbr.rel (0) target = $region33
    $region32: #{tpu_custom_call.1} parent=1 // pred_region
      %s767 = ssub.s32 256, 256
      %768 = vsyncadd [#allocation5], %s767
      %s770 = sshll.u32 [#allocation10], 4
      %s771 = int_to_ptr.vmem [resolvable:$true] %s770
      %773 = dma.vmem_to_hbm [thread:$0]  %s771, 256, %s4, [#allocation5]
    $region33: #{tpu_custom_call.1} parent=1 // pred_fallthru
      _
    // Predicated region
    $region34: #{tpu_custom_call.1} parent=1 // pred_check
      _
    $region35: #{tpu_custom_call.1} parent=1 // pred_check_branch
      %775 = sbr.rel (0) target = $region37
    $region36: #{tpu_custom_call.1} parent=1 // pred_region
      %776 = dma.done [#allocation5], 256
    $region37: #{tpu_custom_call.1} parent=1 // pred_fallthru
      _
    %777 = vsyncpa [#allocation4], 1
    %778 = vsyncpa [#allocation9], 1
    %779 = vsyncpa [#allocation5], 1
    %780 = vsyncpa [#allocation6], 1

</llo_original>
